<compile_context>
chip_gen: v7x
topology: tpu7x:2x2x1
jax: 0.10.0
libtpu: 0.0.40
codegen_flags: <defaults>
</compile_context>

<pallas_src>
import functools

import jax
import jax.numpy as jnp
from jax.experimental import pallas as pl
from jax.experimental.pallas import tpu as pltpu


def get_preprocess_shape(oldh: int, oldw: int, long_side_length: int):
    scale = long_side_length * 1.0 / max(oldh, oldw)
    newh, neww = oldh * scale, oldw * scale
    neww = int(neww + 0.5)
    newh = int(newh + 0.5)
    return newh, neww


def _bilinear_weights(in_size: int, out_size: int, dtype) -> jnp.ndarray:
    """PyTorch align_corners=False bilinear weight matrix of shape (out_size, in_size)."""
    scale = in_size / out_size
    dst = jnp.arange(out_size, dtype=jnp.float32)
    src = jnp.maximum(scale * (dst + 0.5) - 0.5, 0.0)
    i0 = jnp.minimum(jnp.floor(src).astype(jnp.int32), in_size - 1)
    i1 = jnp.minimum(i0 + 1, in_size - 1)
    l1 = src - i0.astype(jnp.float32)
    l0 = 1.0 - l1
    cols = jnp.arange(in_size, dtype=jnp.int32)[None, :]                 # (1, in_size)
    w = (jnp.where(cols == i0[:, None], l0[:, None], 0.0)
         + jnp.where(cols == i1[:, None], l1[:, None], 0.0))             # (out, in)
    return w.astype(dtype)


def _vmem_budget_bytes():
    cap = 64 << 20  # conservative default: v7x physical VMEM per TensorCore
    try:
        cap = int(pltpu.get_tpu_info().vmem_capacity_bytes)
    except Exception:
        pass
    limit = min(int(cap * 0.85), 96 << 20)   # leave headroom below physical VMEM
    budget = int(limit * 0.7)                # target for block-size selection
    return limit, budget


def _resize_kernel(x_ref, wh_ref, wwt_ref, o_ref, *, h_first, compute_dtype):
    # x_ref: (Bc, H, W)   wh_ref: (newh, H)   wwt_ref: (W, neww_pad)
    # o_ref: (Bc, newh, neww_pad)
    bc, h, w = x_ref.shape
    nw = wwt_ref.shape[1]
    wh = wh_ref[...]
    wwt = wwt_ref[...]
    out_is_int = jnp.issubdtype(o_ref.dtype, jnp.integer)

    def store(b, val_f32):
        if out_is_int:
            val_f32 = jnp.round(val_f32)
        o_ref[b] = val_f32.astype(o_ref.dtype)

    if h_first:
        # (Wh @ x_b) @ WwT : per-plane height pass, lane-dense width pass.
        for b in range(bc):
            t = jnp.dot(wh, x_ref[b].astype(compute_dtype),
                        preferred_element_type=jnp.float32)              # (newh, w)
            store(b, jnp.dot(t.astype(compute_dtype), wwt,
                             preferred_element_type=jnp.float32))        # (newh, nw)
    else:
        # Wh @ (x @ WwT) : one large lane-dense width matmul over all Bc planes.
        x2d = x_ref[...].astype(compute_dtype).reshape(bc * h, w)
        t = jnp.dot(x2d, wwt, preferred_element_type=jnp.float32)        # (bc*h, nw)
        t = t.astype(compute_dtype).reshape(bc, h, nw)
        for b in range(bc):
            store(b, jnp.dot(wh, t[b], preferred_element_type=jnp.float32))  # (newh, nw)


@functools.partial(jax.jit,
                   static_argnames=("long_side_length", "interpolation", "compute_dtype"))
def _resize_jit(image, long_side_length, interpolation, compute_dtype):
    if interpolation != "bilinear":
        # TODO(synk): only bilinear interpolation is implemented (bicubic would need a
        # 4-tap weight matrix built analogously).
        raise NotImplementedError("only bilinear interpolation is implemented")

    N, C, H, W = image.shape
    newh, neww = get_preprocess_shape(H, W, long_side_length)
    neww_pad = ((neww + 127) // 128) * 128            # lane-dense (unmasked) output stores
    cdt = jnp.bfloat16 if compute_dtype == "bfloat16" else jnp.float32

    wh = _bilinear_weights(H, newh, cdt)              # (newh, H)
    wwt = _bilinear_weights(W, neww, cdt).T           # (W, neww)
    if neww_pad != neww:
        wwt = jnp.pad(wwt, ((0, 0), (0, neww_pad - neww)))

    NC = N * C
    x = image.reshape(NC, H, W)

    # Choose matmul order by actual MAC count (differs up to ~2x for asymmetric scales).
    macs_h_first = newh * H * W + newh * W * neww_pad      # (Wh @ x) @ WwT
    macs_w_first = H * W * neww_pad + newh * H * neww_pad  # Wh @ (x @ WwT)
    h_first = macs_h_first <= macs_w_first
    macs = macs_h_first if h_first else macs_w_first

    # Channel-block size: largest divisor of NC (capped) that fits the VMEM budget while
    # leaving >= 2 grid steps so both v7x TensorCores get work.
    in_b = image.dtype.itemsize
    w_b = jnp.dtype(cdt).itemsize
    vmem_limit, budget = _vmem_budget_bytes()
    inter = newh * W if h_first else H * neww_pad

    def footprint(bc):
        f = 2 * bc * H * W * in_b                        # input block (double-buffered)
        f += 2 * bc * newh * neww_pad * in_b             # output block (double-buffered)
        f += 2 * (newh * H + W * neww_pad) * w_b         # weight matrices
        f += bc * (inter + newh * neww_pad) * 4          # f32 intermediates / accumulators
        return f

    bc = 1
    for cand in range(min(NC, 16), 0, -1):
        if NC % cand:
            continue
        if NC >= 2 and NC // cand < 2:
            continue
        if footprint(cand) <= budget:
            bc = cand
            break
    # TODO(synk): if even bc=1 exceeds the VMEM budget (very large planes on v7x), a
    # contraction-axis grid with an f32 accumulator would be needed; not implemented.

    kernel = functools.partial(_resize_kernel, h_first=h_first, compute_dtype=cdt)

    out = pl.pallas_call(
        kernel,
        out_shape=jax.ShapeDtypeStruct((NC, newh, neww_pad), image.dtype),
        grid_spec=pltpu.PrefetchScalarGridSpec(
            num_scalar_prefetch=0,
            grid=(NC // bc,),
            in_specs=[
                pl.BlockSpec((bc, H, W), lambda i: (i, 0, 0)),
                pl.BlockSpec((newh, H), lambda i: (0, 0)),
                pl.BlockSpec((W, neww_pad), lambda i: (0, 0)),
            ],
            out_specs=pl.BlockSpec((bc, newh, neww_pad), lambda i: (i, 0, 0)),
        ),
        compiler_params=pltpu.CompilerParams(
            dimension_semantics=("parallel",),
            vmem_limit_bytes=vmem_limit,
        ),
        cost_estimate=pl.CostEstimate(
            flops=2 * NC * macs,
            transcendentals=0,
            bytes_accessed=NC * (H * W + newh * neww_pad) * in_b
            + (newh * H + W * neww_pad) * w_b,
        ),
    )(x, wh, wwt)

    if neww_pad != neww:
        out = out[:, :, :neww]
    return out.reshape(N, C, newh, neww)


def resize_longest_side_med(image, long_side_length: int, interpolation: str = "bilinear",
                            compute_dtype: str = "float32"):
    """Forward pass of ResizeLongestSide_Med (NCHW input)."""
    oldh, oldw = image.shape[-2:]
    if max(oldh, oldw) == long_side_length:
        return image
    return _resize_jit(image, long_side_length, interpolation, compute_dtype)


if __name__ == "__main__":
    key = jax.random.PRNGKey(0)
    k1, k2 = jax.random.split(key)

    # Case 1: small upscale with non-128-aligned output width
    # (exercises height-first order + lane padding + channel batching, grid length 2).
    x1 = jax.random.uniform(k1, (2, 4, 16, 12), dtype=jnp.float32)
    out1 = jax.block_until_ready(resize_longest_side_med(x1, 24))
    nh1, nw1 = get_preprocess_shape(16, 12, 24)
    assert out1.shape == (2, 4, nh1, nw1), out1.shape
    ref1 = jnp.einsum("oh,nchw,wp->ncop",
                      _bilinear_weights(16, nh1, jnp.float32), x1,
                      _bilinear_weights(12, nw1, jnp.float32).T)
    err1 = float(jnp.max(jnp.abs(out1 - ref1)))
    assert err1 < 2e-2, err1

    # Case 2: landscape upscale (exercises the width-first matmul order with the
    # single big reshaped width matmul).
    x2 = jax.random.uniform(k2, (1, 2, 64, 128), dtype=jnp.float32)
    out2 = jax.block_until_ready(resize_longest_side_med(x2, 256))
    nh2, nw2 = get_preprocess_shape(64, 128, 256)
    assert out2.shape == (1, 2, nh2, nw2), out2.shape
    ref2 = jnp.einsum("oh,nchw,wp->ncop",
                      _bilinear_weights(64, nh2, jnp.float32), x2,
                      _bilinear_weights(128, nw2, jnp.float32).T)
    err2 = float(jnp.max(jnp.abs(out2 - ref2)))
    assert err2 < 2e-2, err2

    # Identity case: longest side already matches -> input returned unchanged.
    y = resize_longest_side_med(x1, 16)
    assert y is x1

    print("KERNEL_OK")
</pallas_src>

<mosaic_0001>
module attributes {stable_mosaic.version = 11 : i64} {
  func.func @_resize_kernel(%arg0: i32, %arg1: memref<4x16x12xf32, #tpu.memory_space<vmem>>, %arg2: memref<24x16xf32, #tpu.memory_space<vmem>>, %arg3: memref<12x128xf32, #tpu.memory_space<vmem>>, %arg4: memref<4x24x128xf32, #tpu.memory_space<vmem>>) attributes {dimension_semantics = [#tpu.dimension_semantics<parallel>], iteration_bounds = array<i64: 2>, scalar_prefetch = 0 : i64, scratch_operands = 0 : i64, tpu.core_type = #tpu.core_type<tc>, window_params = [{transform_indices = @transform_0, window_bounds = array<i64: 4, 16, 12>}, {pipeline_mode = #tpu.pipeline_mode<synchronous>, transform_indices = @transform_1, window_bounds = array<i64: 24, 16>}, {pipeline_mode = #tpu.pipeline_mode<synchronous>, transform_indices = @transform_2, window_bounds = array<i64: 12, 128>}, {transform_indices = @transform_3, window_bounds = array<i64: 4, 24, 128>}]} {
    %c0 = arith.constant 0 : index
    %c0_0 = arith.constant 0 : index
    %0 = vector.load %arg2[%c0, %c0_0] : memref<24x16xf32, #tpu.memory_space<vmem>>, vector<24x16xf32>
    %c0_1 = arith.constant 0 : index
    %c0_2 = arith.constant 0 : index
    %1 = vector.load %arg3[%c0_1, %c0_2] : memref<12x128xf32, #tpu.memory_space<vmem>>, vector<12x128xf32>
    %c0_3 = arith.constant 0 : index
    %c0_4 = arith.constant 0 : index
    %c0_5 = arith.constant 0 : index
    %2 = vector.load %arg1[%c0_3, %c0_4, %c0_5] : memref<4x16x12xf32, #tpu.memory_space<vmem>>, vector<1x16x12xf32>
    %3 = vector.shape_cast %2 : vector<1x16x12xf32> to vector<16x12xf32>
    %cst = arith.constant dense<0.000000e+00> : vector<24x12xf32>
    %4 = tpu.matmul %0, %3, %cst {dimension_numbers = #tpu.dot_dimension_numbers<[1], [0], [0], [1], [0, 0, 1, 1], [], []>} : vector<24x16xf32>, vector<16x12xf32>, vector<24x12xf32> -> vector<24x12xf32>
    %cst_6 = arith.constant dense<0.000000e+00> : vector<24x128xf32>
    %5 = tpu.matmul %4, %1, %cst_6 {dimension_numbers = #tpu.dot_dimension_numbers<[1], [0], [0], [1], [0, 0, 1, 1], [], []>} : vector<24x12xf32>, vector<12x128xf32>, vector<24x128xf32> -> vector<24x128xf32>
    %c0_7 = arith.constant 0 : index
    %c0_8 = arith.constant 0 : index
    %c0_9 = arith.constant 0 : index
    %6 = vector.load %arg4[%c0_7, %c0_8, %c0_9] : memref<4x24x128xf32, #tpu.memory_space<vmem>>, vector<1x24x128xf32>
    %7 = vector.shape_cast %6 : vector<1x24x128xf32> to vector<24x128xf32>
    %8 = vector.shape_cast %5 : vector<24x128xf32> to vector<1x24x128xf32>
    tpu.vector_store %arg4[%c0_7, %c0_8, %c0_9], %8 {strides = array<i32>} : memref<4x24x128xf32, #tpu.memory_space<vmem>>, vector<1x24x128xf32>,
    %c1 = arith.constant 1 : index
    %c0_10 = arith.constant 0 : index
    %c0_11 = arith.constant 0 : index
    %9 = vector.load %arg1[%c1, %c0_10, %c0_11] : memref<4x16x12xf32, #tpu.memory_space<vmem>>, vector<1x16x12xf32>
    %10 = vector.shape_cast %9 : vector<1x16x12xf32> to vector<16x12xf32>
    %cst_12 = arith.constant dense<0.000000e+00> : vector<24x12xf32>
    %11 = tpu.matmul %0, %10, %cst_12 {dimension_numbers = #tpu.dot_dimension_numbers<[1], [0], [0], [1], [0, 0, 1, 1], [], []>} : vector<24x16xf32>, vector<16x12xf32>, vector<24x12xf32> -> vector<24x12xf32>
    %cst_13 = arith.constant dense<0.000000e+00> : vector<24x128xf32>
    %12 = tpu.matmul %11, %1, %cst_13 {dimension_numbers = #tpu.dot_dimension_numbers<[1], [0], [0], [1], [0, 0, 1, 1], [], []>} : vector<24x12xf32>, vector<12x128xf32>, vector<24x128xf32> -> vector<24x128xf32>
    %c1_14 = arith.constant 1 : index
    %c0_15 = arith.constant 0 : index
    %c0_16 = arith.constant 0 : index
    %13 = vector.load %arg4[%c1_14, %c0_15, %c0_16] : memref<4x24x128xf32, #tpu.memory_space<vmem>>, vector<1x24x128xf32>
    %14 = vector.shape_cast %13 : vector<1x24x128xf32> to vector<24x128xf32>
    %15 = vector.shape_cast %12 : vector<24x128xf32> to vector<1x24x128xf32>
    tpu.vector_store %arg4[%c1_14, %c0_15, %c0_16], %15 {strides = array<i32>} : memref<4x24x128xf32, #tpu.memory_space<vmem>>, vector<1x24x128xf32>,
    %c2 = arith.constant 2 : index
    %c0_17 = arith.constant 0 : index
    %c0_18 = arith.constant 0 : index
    %16 = vector.load %arg1[%c2, %c0_17, %c0_18] : memref<4x16x12xf32, #tpu.memory_space<vmem>>, vector<1x16x12xf32>
    %17 = vector.shape_cast %16 : vector<1x16x12xf32> to vector<16x12xf32>
    %cst_19 = arith.constant dense<0.000000e+00> : vector<24x12xf32>
    %18 = tpu.matmul %0, %17, %cst_19 {dimension_numbers = #tpu.dot_dimension_numbers<[1], [0], [0], [1], [0, 0, 1, 1], [], []>} : vector<24x16xf32>, vector<16x12xf32>, vector<24x12xf32> -> vector<24x12xf32>
    %cst_20 = arith.constant dense<0.000000e+00> : vector<24x128xf32>
    %19 = tpu.matmul %18, %1, %cst_20 {dimension_numbers = #tpu.dot_dimension_numbers<[1], [0], [0], [1], [0, 0, 1, 1], [], []>} : vector<24x12xf32>, vector<12x128xf32>, vector<24x128xf32> -> vector<24x128xf32>
    %c2_21 = arith.constant 2 : index
    %c0_22 = arith.constant 0 : index
    %c0_23 = arith.constant 0 : index
    %20 = vector.load %arg4[%c2_21, %c0_22, %c0_23] : memref<4x24x128xf32, #tpu.memory_space<vmem>>, vector<1x24x128xf32>
    %21 = vector.shape_cast %20 : vector<1x24x128xf32> to vector<24x128xf32>
    %22 = vector.shape_cast %19 : vector<24x128xf32> to vector<1x24x128xf32>
    tpu.vector_store %arg4[%c2_21, %c0_22, %c0_23], %22 {strides = array<i32>} : memref<4x24x128xf32, #tpu.memory_space<vmem>>, vector<1x24x128xf32>,
    %c3 = arith.constant 3 : index
    %c0_24 = arith.constant 0 : index
    %c0_25 = arith.constant 0 : index
    %23 = vector.load %arg1[%c3, %c0_24, %c0_25] : memref<4x16x12xf32, #tpu.memory_space<vmem>>, vector<1x16x12xf32>
    %24 = vector.shape_cast %23 : vector<1x16x12xf32> to vector<16x12xf32>
    %cst_26 = arith.constant dense<0.000000e+00> : vector<24x12xf32>
    %25 = tpu.matmul %0, %24, %cst_26 {dimension_numbers = #tpu.dot_dimension_numbers<[1], [0], [0], [1], [0, 0, 1, 1], [], []>} : vector<24x16xf32>, vector<16x12xf32>, vector<24x12xf32> -> vector<24x12xf32>
    %cst_27 = arith.constant dense<0.000000e+00> : vector<24x128xf32>
    %26 = tpu.matmul %25, %1, %cst_27 {dimension_numbers = #tpu.dot_dimension_numbers<[1], [0], [0], [1], [0, 0, 1, 1], [], []>} : vector<24x12xf32>, vector<12x128xf32>, vector<24x128xf32> -> vector<24x128xf32>
    %c3_28 = arith.constant 3 : index
    %c0_29 = arith.constant 0 : index
    %c0_30 = arith.constant 0 : index
    %27 = vector.load %arg4[%c3_28, %c0_29, %c0_30] : memref<4x24x128xf32, #tpu.memory_space<vmem>>, vector<1x24x128xf32>
    %28 = vector.shape_cast %27 : vector<1x24x128xf32> to vector<24x128xf32>
    %29 = vector.shape_cast %26 : vector<24x128xf32> to vector<1x24x128xf32>
    tpu.vector_store %arg4[%c3_28, %c0_29, %c0_30], %29 {strides = array<i32>} : memref<4x24x128xf32, #tpu.memory_space<vmem>>, vector<1x24x128xf32>,
    return
  }
  func.func @transform_0(%arg0: i32) -> (i32, i32, i32) {
    %c0_i32 = arith.constant 0 : i32
    %c0_i32_0 = arith.constant 0 : i32
    %c0_i32_1 = arith.constant 0 : i32
    return %arg0, %c0_i32, %c0_i32_0 : i32, i32, i32
  }
  func.func @transform_1(%arg0: i32) -> (i32, i32) {
    %c0_i32 = arith.constant 0 : i32
    %c0_i32_0 = arith.constant 0 : i32
    %c0_i32_1 = arith.constant 0 : i32
    return %c0_i32, %c0_i32_0 : i32, i32
  }
  func.func @transform_2(%arg0: i32) -> (i32, i32) {
    %c0_i32 = arith.constant 0 : i32
    %c0_i32_0 = arith.constant 0 : i32
    %c0_i32_1 = arith.constant 0 : i32
    return %c0_i32, %c0_i32_0 : i32, i32
  }
  func.func @transform_3(%arg0: i32) -> (i32, i32, i32) {
    %c0_i32 = arith.constant 0 : i32
    %c0_i32_0 = arith.constant 0 : i32
    %c0_i32_1 = arith.constant 0 : i32
    return %arg0, %c0_i32, %c0_i32_0 : i32, i32, i32
  }
}

</mosaic_0001>

<llo_original>
// kernel: _resize_jit.1
$region0: #{_resize_jit.1}
  #allocation0 [shape = 'u32[]', space=smem, size = 0x4, offset = 0x4, fixed_abs, tag = 'smem constant byte address 0x4 - core index']
  #allocation1 [shape = 'u32[144,128]{1,0:T(1,128)}', space=vmem, size = 0x12000, scoped, tag = 'internal scratch']
  %s0 = inlined_call_operand.vmem [shape: f32[8,16,12], index: 0, kind: input, shape index: {}]
  %s1 = inlined_call_operand.vmem [shape: f32[24,16], index: 1, kind: input, shape index: {}]
  %s2 = inlined_call_operand.vmem [shape: f32[12,128], index: 2, kind: input, shape index: {}]
  %s3 = inlined_call_operand.vmem [shape: f32[8,24,128], index: 3, kind: output, shape index: {}]
  %s4 = sld [smem:[#allocation0]]
  $region45: #{_resize_jit.1} parent=0
    _
  %s6 = ssub.s32 1, %s4
  %s7 = scalar_select 0, %s6, %s4
  loop: start=0, step=1, limit=4
  $region2: #{_resize_jit.1} parent=0 // loop_pre_header
    _
  $region3: #{_resize_jit.1} parent=0 // loop_header
    %s9 = sphi 0, %s13
    %p10 = scmp.ge.s32.totalorder %s9, 4
    %s19 = sphi 0, %s21
    %s22 = sphi 0, %s19
    %s23 = sphi 0, %s22
    %s39 = sphi 0, %s23
    %s43 = sphi 0, %s43
    %s45 = sphi 0, %s43
    %s46 = sphi 0, %s45
    %s60 = sphi 0, %s46
    %s64 = sphi 0, %s64
    %s66 = sphi 0, %s64
    %s67 = sphi 0, %s66
    %s81 = sphi 0, %s67
    %s87 = sphi 0, %s89
    %s90 = sphi 0, %s87
    %s91 = sphi 0, %s90
    %s107 = sphi 0, %s91
  $region4: #{_resize_jit.1} parent=0 // loop_header_branch
    %12 = sbr.rel (%p10) target = $region8
  $region5: #{_resize_jit.1} parent=0 // loop_body
    %s14 = ssub.s32 %s9, 1
    %s15 = ssub.s32 %s9, 2
    %s16 = sadd.s32 %s9, 1
    %s17 = ssub.s32 %s9, %s16
    %p18 = scmp.eq.s32.totalorder %s17, 0
    %s20 = sadd.s32 %s19, 1
    %s21 = scalar_select %p18, %s19, %s20
    %p24 = pneg %p18
    %p25 = scmp.eq.s32.totalorder %s9, 1
    %p26 = por %p24, %p25
    %p27 = scmp.ne.s32.totalorder %s19, %s22
    %p28 = scmp.eq.s32.totalorder %s9, 0
    %p29 = por %p27, %p28
    %p30 = scmp.ne.s32.totalorder %s19, %s22
    %p31 = scmp.eq.s32.totalorder %s14, 1
    %p32 = por %p30, %p31
    %p33 = scmp.ne.s32.totalorder %s22, %s23
    %p34 = scmp.eq.s32.totalorder %s14, 0
    %p35 = por %p33, %p34
    %p36 = scmp.ne.s32.totalorder %s22, %s23
    %p37 = scmp.eq.s32.totalorder %s15, 1
    %p38 = por %p36, %p37
    %p40 = scmp.ne.s32.totalorder %s23, %s39
    %p41 = scmp.eq.s32.totalorder %s15, 0
    %p42 = por %p40, %p41
    %s44 = sadd.s32 %s43, 1
    %p47 = scmp.eq.s32.totalorder %s9, 1
    %p48 = scmp.ne.s32.totalorder %s43, %s45
    %p49 = scmp.eq.s32.totalorder %s9, 0
    %p50 = por %p48, %p49
    %p51 = scmp.ne.s32.totalorder %s43, %s45
    %p52 = scmp.eq.s32.totalorder %s14, 1
    %p53 = por %p51, %p52
    %p54 = scmp.ne.s32.totalorder %s45, %s46
    %p55 = scmp.eq.s32.totalorder %s14, 0
    %p56 = por %p54, %p55
    %p57 = scmp.ne.s32.totalorder %s45, %s46
    %p58 = scmp.eq.s32.totalorder %s15, 1
    %p59 = por %p57, %p58
    %p61 = scmp.ne.s32.totalorder %s46, %s60
    %p62 = scmp.eq.s32.totalorder %s15, 0
    %p63 = por %p61, %p62
    %s65 = sadd.s32 %s64, 1
    %p68 = scmp.eq.s32.totalorder %s9, 1
    %p69 = scmp.ne.s32.totalorder %s64, %s66
    %p70 = scmp.eq.s32.totalorder %s9, 0
    %p71 = por %p69, %p70
    %p72 = scmp.ne.s32.totalorder %s64, %s66
    %p73 = scmp.eq.s32.totalorder %s14, 1
    %p74 = por %p72, %p73
    %p75 = scmp.ne.s32.totalorder %s66, %s67
    %p76 = scmp.eq.s32.totalorder %s14, 0
    %p77 = por %p75, %p76
    %p78 = scmp.ne.s32.totalorder %s66, %s67
    %p79 = scmp.eq.s32.totalorder %s15, 1
    %p80 = por %p78, %p79
    %p82 = scmp.ne.s32.totalorder %s67, %s81
    %p83 = scmp.eq.s32.totalorder %s15, 0
    %p84 = por %p82, %p83
    %s85 = ssub.s32 %s9, %s16
    %p86 = scmp.eq.s32.totalorder %s85, 0
    %s88 = sadd.s32 %s87, 1
    %s89 = scalar_select %p86, %s87, %s88
    %p92 = pneg %p86
    %p93 = scmp.eq.s32.totalorder %s9, 1
    %p94 = por %p92, %p93
    %p95 = scmp.ne.s32.totalorder %s87, %s90
    %p96 = scmp.eq.s32.totalorder %s9, 0
    %p97 = por %p95, %p96
    %p98 = scmp.ne.s32.totalorder %s87, %s90
    %p99 = scmp.eq.s32.totalorder %s14, 1
    %p100 = por %p98, %p99
    %p101 = scmp.ne.s32.totalorder %s90, %s91
    %p102 = scmp.eq.s32.totalorder %s14, 0
    %p103 = por %p101, %p102
    %p104 = scmp.ne.s32.totalorder %s90, %s91
    %p105 = scmp.eq.s32.totalorder %s15, 1
    %p106 = por %p104, %p105
    %p108 = scmp.ne.s32.totalorder %s91, %s107
    %p109 = scmp.eq.s32.totalorder %s15, 0
    %p110 = por %p108, %p109
    %p111 = scmp.le.s32.totalorder 1, %s9
    %p112 = scmp.lt.s32.totalorder %s9, 3
    %p113 = pnand %p111, %p112
    %p114 = pneg %p113
    // Predicated region
    $region9: #{_resize_jit.1} parent=5 // pred_check
      _
    $region10: #{_resize_jit.1} parent=5 // pred_check_branch
      %116 = sbr.rel (%p113) target = $region12
    $region11: #{_resize_jit.1} parent=5 // pred_region
      %s117 = ssub.s32 %s9, 1
      // Predicated region
      $region13: #{_resize_jit.1} parent=11 // pred_check
        %p118 = pneg %p56
      $region14: #{_resize_jit.1} parent=11 // pred_check_branch
        %120 = sbr.rel (%p118) target = $region16
      $region15: #{_resize_jit.1} parent=11 // pred_region
        _
      $region16: #{_resize_jit.1} parent=11 // pred_fallthru
        _
      // Predicated region
      $region17: #{_resize_jit.1} parent=11 // pred_check
        %p121 = pneg %p77
      $region18: #{_resize_jit.1} parent=11 // pred_check_branch
        %123 = sbr.rel (%p121) target = $region20
      $region19: #{_resize_jit.1} parent=11 // pred_region
        _
      $region20: #{_resize_jit.1} parent=11 // pred_fallthru
        _
    $region12: #{_resize_jit.1} parent=5 // pred_fallthru
      _
    %p124 = scmp.lt.s32.totalorder %s9, 2
    // Predicated region
    $region21: #{_resize_jit.1} parent=5 // pred_check
      %p125 = pneg %p124
    $region22: #{_resize_jit.1} parent=5 // pred_check_branch
      %127 = sbr.rel (%p125) target = $region24
    $region23: #{_resize_jit.1} parent=5 // pred_region
      // Predicated region
      $region25: #{_resize_jit.1} parent=23 // pred_check
        %p128 = pneg %p29
      $region26: #{_resize_jit.1} parent=23 // pred_check_branch
        %130 = sbr.rel (%p128) target = $region28
      $region27: #{_resize_jit.1} parent=23 // pred_region
        %s131 = smul.u32 4, %s9
        %p132 = scmp.lt.s32.totalorder %s131, 7
        %s133 = scalar_select %p132, %s131, 7
        %s134 = smul.addr %s133, 2
        %s135 = smul.addr %s134, 8
        %s136 = scalar_lea.vmem %s0, %s135
        %s137 = smul.u32 4, %s9
      $region28: #{_resize_jit.1} parent=23 // pred_fallthru
        _
    $region24: #{_resize_jit.1} parent=5 // pred_fallthru
      _
    %p138 = scmp.le.s32.totalorder 1, %s9
    %p139 = scmp.lt.s32.totalorder %s9, 3
    %p140 = pnand %p138, %p139
    %p141 = pneg %p140
    // Predicated region
    $region29: #{_resize_jit.1} parent=5 // pred_check
      _
    $region30: #{_resize_jit.1} parent=5 // pred_check_branch
      %143 = sbr.rel (%p140) target = $region32
    $region31: #{_resize_jit.1} parent=5 // pred_region
      %s144 = ssub.s32 %s9, 1
      %s145 = smul.u32 4, %s14
      %p146 = scmp.lt.s32.totalorder %s145, 7
      %s147 = scalar_select %p146, %s145, 7
      %s148 = smul.addr %s147, 2
      %s149 = smul.addr %s148, 8
      %s150 = scalar_lea.vmem %s0, %s149
      %p151 = pneg %p35
      %p152 = pneg %p32
      %p153 = pneg %p56
      %p154 = pneg %p53
      %p155 = pneg %p77
      %p156 = pneg %p74
      %p157 = pneg %p103
      %p158 = pneg %p100
      %s159 = smul.u32 4, %s14
      %p160 = scmp.lt.s32.totalorder %s159, 7
      %s161 = scalar_select %p160, %s159, 7
      %s162 = smul.addr %s161, 3
      %s163 = smul.addr %s162, 8
      %s164 = scalar_lea.vmem %s3, %s163
      %s165 = smul.u32 4, %s14
      %p166 = scmp.lt.s32.totalorder %s165, 7
      %s167 = scalar_select %p166, %s165, 7
      %s168 = smul.addr %s167, 2
      %s169 = smul.addr %s168, 8
      %s170 = scalar_lea.vmem %s0, %s169
      %s171 = smul.u32 4, %s14
      %s172 = smul.u32 4, %s14
      %p173 = scmp.lt.s32.totalorder %s172, 7
      %s174 = scalar_select %p173, %s172, 7
      %s175 = smul.addr %s174, 3
      %s176 = smul.addr %s175, 8
      %s177 = scalar_lea.vmem %s3, %s176
      %s178 = smul.u32 4, %s14
      %v179 = vld [vmem:[%s1] sm:$0xff]
      %v180 = vld [vmem:[%s1 + $0x8] sm:$0xff]
      %v181 = vld [vmem:[%s1 + $0x10] sm:$0xff]
      %v182 = vld [vmem:[%s2] sm:$0xff]
      %v183 = vld [vmem:[%s2 + $0x8] sm:$0xf]
      %v184 = vld [vmem:[%s170] sm:$0xff]
      %v185 = vld [vmem:[%s170 + $0x8] sm:$0xff]
      %vm186 = vcmask 130048
      %v188 = vsel %vm186, %v179, 0
      %v191 = vsel %vm186, %v180, 0
      %v194 = vsel %vm186, %v181, 0
      %196 = vmatprep.subr.mxu0 0.0
      %197 = vmatpush1.msra.mxu0 %v184
      %198 = vmatprep.subr.mxu0 0.0
      %199 = vmatpush1.msra.mxu0 %v185
      %200 = vmatprep.subr.mxu0 0.0
      %201 = vmatpush1.msra.mxu0 0.0
      %202 = vmatprep.subr.mxu0 0.0
      %203 = vmatpush1.msra.mxu0 0.0
      %204 = vmatprep.subr.mxu0 0.0
      %205 = vmatpush1.msra.mxu0 0.0
      %206 = vmatprep.subr.mxu0 0.0
      %207 = vmatpush1.msra.mxu0 0.0
      %208 = vmatprep.subr.mxu0 0.0
      %209 = vmatpush1.msra.mxu0 0.0
      %210 = vmatprep.subr.mxu0 0.0
      %211 = vmatpush1.msra.mxu0 0.0
      %212 = vmatprep.subr.mxu0 0.0
      %213 = vmatpush1.msra.mxu0 0.0
      %214 = vmatprep.subr.mxu0 0.0
      %215 = vmatpush1.msra.mxu0 0.0
      %216 = vmatprep.subr.mxu0 0.0
      %217 = vmatpush1.msra.mxu0 0.0
      %218 = vmatprep.subr.mxu0 0.0
      %219 = vmatpush1.msra.mxu0 0.0
      %220 = vmatprep.subr.mxu0 0.0
      %221 = vmatpush1.msra.mxu0 0.0
      %222 = vmatprep.subr.mxu0 0.0
      %223 = vmatpush1.msra.mxu0 0.0
      %224 = vmatprep.subr.mxu0 0.0
      %225 = vmatpush1.msra.mxu0 0.0
      %226 = vmatprep.subr.mxu0 0.0
      %227 = vmatpush1.msra.mxu0 0.0
      %228 = vmatprep.subr.mxu0 0.0
      %229 = vmatpush1.msra.mxu0 0.0
      %230 = vmatprep.subr.mxu0 0.0
      %231 = vmatpush1.msra.mxu0 0.0
      %232 = vmatprep.subr.mxu0 0.0
      %233 = vmatpush1.msra.mxu0 0.0
      %234 = vmatprep.subr.mxu0 0.0
      %235 = vmatpush1.msra.mxu0 0.0
      %236 = vmatprep.subr.mxu0 0.0
      %237 = vmatpush1.msra.mxu0 0.0
      %238 = vmatprep.subr.mxu0 0.0
      %239 = vmatpush1.msra.mxu0 0.0
      %240 = vmatprep.subr.mxu0 0.0
      %241 = vmatpush1.msra.mxu0 0.0
      %242 = vmatprep.subr.mxu0 0.0
      %243 = vmatpush1.msra.mxu0 0.0
      %244 = vmatprep.subr.mxu0 0.0
      %245 = vmatpush1.msra.mxu0 0.0
      %246 = vmatprep.subr.mxu0 0.0
      %247 = vmatpush1.msra.mxu0 0.0
      %248 = vmatprep.subr.mxu0 0.0
      %249 = vmatpush1.msra.mxu0 0.0
      %250 = vmatprep.subr.mxu0 0.0
      %251 = vmatpush1.msra.mxu0 0.0
      %252 = vmatprep.subr.mxu0 0.0
      %253 = vmatpush1.msra.mxu0 0.0
      %254 = vmatprep.subr.mxu0 0.0
      %255 = vmatpush1.msra.mxu0 0.0
      %256 = vmatprep.subr.mxu0 0.0
      %257 = vmatpush1.msra.mxu0 0.0
      %258 = vmatprep.subr.mxu0 0.0
      %259 = vmatpush1.msra.mxu0 0.0
      %260 = vmatprep.mubr.f32.mxu0 0.0
      %261 = vmatmul.mubr.f32.gmra.mrb[0].mxu0 %v188
      %v262 = vpop.f32.mrb[0].mxu0
      %v263 = vadd.f32 0.0, %v262
      %v264 = vpop.f32.mrb[0].mxu0
      %265 = vmatprep.mubr.f32.mxu0 0.0
      %266 = vmatmul.mubr.f32.gmra.mrb[0].mxu0 %v191
      %v267 = vpop.f32.mrb[0].mxu0
      %v268 = vadd.f32 0.0, %v267
      %v269 = vpop.f32.mrb[0].mxu0
      %270 = vmatprep.mubr.f32.mxu0 0.0
      %271 = vmatmul.mubr.f32.gmra.mrb[0].mxu0 %v194
      %v272 = vpop.f32.mrb[0].mxu0
      %v273 = vadd.f32 0.0, %v272
      %v274 = vpop.f32.mrb[0].mxu0
      %275 = vdwg.mxu0
      %vm276 = vcmask 97280
      %v278 = vsel %vm276, %v263, 0
      %v281 = vsel %vm276, %v268, 0
      %v284 = vsel %vm276, %v273, 0
      %vm286 = vcmask 1043456
      %v288 = vsel %vm286, %v183, 0
      %290 = vmatprep.subr.mxu0 0.0
      %291 = vmatpush1.msra.mxu0 %v182
      %292 = vmatprep.subr.mxu0 0.0
      %293 = vmatpush1.msra.mxu0 %v288
      %294 = vmatprep.subr.mxu0 0.0
      %295 = vmatpush1.msra.mxu0 0.0
      %296 = vmatprep.subr.mxu0 0.0
      %297 = vmatpush1.msra.mxu0 0.0
      %298 = vmatprep.subr.mxu0 0.0
      %299 = vmatpush1.msra.mxu0 0.0
      %300 = vmatprep.subr.mxu0 0.0
      %301 = vmatpush1.msra.mxu0 0.0
      %302 = vmatprep.subr.mxu0 0.0
      %303 = vmatpush1.msra.mxu0 0.0
      %304 = vmatprep.subr.mxu0 0.0
      %305 = vmatpush1.msra.mxu0 0.0
      %306 = vmatprep.subr.mxu0 0.0
      %307 = vmatpush1.msra.mxu0 0.0
      %308 = vmatprep.subr.mxu0 0.0
      %309 = vmatpush1.msra.mxu0 0.0
      %310 = vmatprep.subr.mxu0 0.0
      %311 = vmatpush1.msra.mxu0 0.0
      %312 = vmatprep.subr.mxu0 0.0
      %313 = vmatpush1.msra.mxu0 0.0
      %314 = vmatprep.subr.mxu0 0.0
      %315 = vmatpush1.msra.mxu0 0.0
      %316 = vmatprep.subr.mxu0 0.0
      %317 = vmatpush1.msra.mxu0 0.0
      %318 = vmatprep.subr.mxu0 0.0
      %319 = vmatpush1.msra.mxu0 0.0
      %320 = vmatprep.subr.mxu0 0.0
      %321 = vmatpush1.msra.mxu0 0.0
      %322 = vmatprep.subr.mxu0 0.0
      %323 = vmatpush1.msra.mxu0 0.0
      %324 = vmatprep.subr.mxu0 0.0
      %325 = vmatpush1.msra.mxu0 0.0
      %326 = vmatprep.subr.mxu0 0.0
      %327 = vmatpush1.msra.mxu0 0.0
      %328 = vmatprep.subr.mxu0 0.0
      %329 = vmatpush1.msra.mxu0 0.0
      %330 = vmatprep.subr.mxu0 0.0
      %331 = vmatpush1.msra.mxu0 0.0
      %332 = vmatprep.subr.mxu0 0.0
      %333 = vmatpush1.msra.mxu0 0.0
      %334 = vmatprep.subr.mxu0 0.0
      %335 = vmatpush1.msra.mxu0 0.0
      %336 = vmatprep.subr.mxu0 0.0
      %337 = vmatpush1.msra.mxu0 0.0
      %338 = vmatprep.subr.mxu0 0.0
      %339 = vmatpush1.msra.mxu0 0.0
      %340 = vmatprep.subr.mxu0 0.0
      %341 = vmatpush1.msra.mxu0 0.0
      %342 = vmatprep.subr.mxu0 0.0
      %343 = vmatpush1.msra.mxu0 0.0
      %344 = vmatprep.subr.mxu0 0.0
      %345 = vmatpush1.msra.mxu0 0.0
      %346 = vmatprep.subr.mxu0 0.0
      %347 = vmatpush1.msra.mxu0 0.0
      %348 = vmatprep.subr.mxu0 0.0
      %349 = vmatpush1.msra.mxu0 0.0
      %350 = vmatprep.subr.mxu0 0.0
      %351 = vmatpush1.msra.mxu0 0.0
      %352 = vmatprep.subr.mxu0 0.0
      %353 = vmatpush1.msra.mxu0 0.0
      %354 = vmatprep.mubr.f32.mxu0 0.0
      %355 = vmatmul.mubr.f32.gmra.mrb[0].mxu0 %v278
      %v356 = vpop.f32.mrb[0].mxu0
      %v357 = vadd.f32 0.0, %v356
      %v358 = vpop.f32.mrb[0].mxu0
      %359 = vmatprep.mubr.f32.mxu0 0.0
      %360 = vmatmul.mubr.f32.gmra.mrb[0].mxu0 %v281
      %v361 = vpop.f32.mrb[0].mxu0
      %v362 = vadd.f32 0.0, %v361
      %v363 = vpop.f32.mrb[0].mxu0
      %364 = vmatprep.mubr.f32.mxu0 0.0
      %365 = vmatmul.mubr.f32.gmra.mrb[0].mxu0 %v284
      %v366 = vpop.f32.mrb[0].mxu0
      %v367 = vadd.f32 0.0, %v366
      %v368 = vpop.f32.mrb[0].mxu0
      %369 = vdwg.mxu0
      %370 = vst [vmem:[%s177] sm:$0xff] %v357
      %371 = vst [vmem:[%s177 + $0x8] sm:$0xff] %v362
      %372 = vst [vmem:[%s177 + $0x10] sm:$0xff] %v367
      %s373 = scalar_lea.vmem %s170, 16
      %v374 = vld [vmem:[%s373] sm:$0xff]
      %v375 = vld [vmem:[%s373 + $0x8] sm:$0xff]
      %376 = vmatprep.subr.mxu0 0.0
      %377 = vmatpush1.msra.mxu0 %v374
      %378 = vmatprep.subr.mxu0 0.0
      %379 = vmatpush1.msra.mxu0 %v375
      %380 = vmatprep.subr.mxu0 0.0
      %381 = vmatpush1.msra.mxu0 0.0
      %382 = vmatprep.subr.mxu0 0.0
      %383 = vmatpush1.msra.mxu0 0.0
      %384 = vmatprep.subr.mxu0 0.0
      %385 = vmatpush1.msra.mxu0 0.0
      %386 = vmatprep.subr.mxu0 0.0
      %387 = vmatpush1.msra.mxu0 0.0
      %388 = vmatprep.subr.mxu0 0.0
      %389 = vmatpush1.msra.mxu0 0.0
      %390 = vmatprep.subr.mxu0 0.0
      %391 = vmatpush1.msra.mxu0 0.0
      %392 = vmatprep.subr.mxu0 0.0
      %393 = vmatpush1.msra.mxu0 0.0
      %394 = vmatprep.subr.mxu0 0.0
      %395 = vmatpush1.msra.mxu0 0.0
      %396 = vmatprep.subr.mxu0 0.0
      %397 = vmatpush1.msra.mxu0 0.0
      %398 = vmatprep.subr.mxu0 0.0
      %399 = vmatpush1.msra.mxu0 0.0
      %400 = vmatprep.subr.mxu0 0.0
      %401 = vmatpush1.msra.mxu0 0.0
      %402 = vmatprep.subr.mxu0 0.0
      %403 = vmatpush1.msra.mxu0 0.0
      %404 = vmatprep.subr.mxu0 0.0
      %405 = vmatpush1.msra.mxu0 0.0
      %406 = vmatprep.subr.mxu0 0.0
      %407 = vmatpush1.msra.mxu0 0.0
      %408 = vmatprep.subr.mxu0 0.0
      %409 = vmatpush1.msra.mxu0 0.0
      %410 = vmatprep.subr.mxu0 0.0
      %411 = vmatpush1.msra.mxu0 0.0
      %412 = vmatprep.subr.mxu0 0.0
      %413 = vmatpush1.msra.mxu0 0.0
      %414 = vmatprep.subr.mxu0 0.0
      %415 = vmatpush1.msra.mxu0 0.0
      %416 = vmatprep.subr.mxu0 0.0
      %417 = vmatpush1.msra.mxu0 0.0
      %418 = vmatprep.subr.mxu0 0.0
      %419 = vmatpush1.msra.mxu0 0.0
      %420 = vmatprep.subr.mxu0 0.0
      %421 = vmatpush1.msra.mxu0 0.0
      %422 = vmatprep.subr.mxu0 0.0
      %423 = vmatpush1.msra.mxu0 0.0
      %424 = vmatprep.subr.mxu0 0.0
      %425 = vmatpush1.msra.mxu0 0.0
      %426 = vmatprep.subr.mxu0 0.0
      %427 = vmatpush1.msra.mxu0 0.0
      %428 = vmatprep.subr.mxu0 0.0
      %429 = vmatpush1.msra.mxu0 0.0
      %430 = vmatprep.subr.mxu0 0.0
      %431 = vmatpush1.msra.mxu0 0.0
      %432 = vmatprep.subr.mxu0 0.0
      %433 = vmatpush1.msra.mxu0 0.0
      %434 = vmatprep.subr.mxu0 0.0
      %435 = vmatpush1.msra.mxu0 0.0
      %436 = vmatprep.subr.mxu0 0.0
      %437 = vmatpush1.msra.mxu0 0.0
      %438 = vmatprep.subr.mxu0 0.0
      %439 = vmatpush1.msra.mxu0 0.0
      %440 = vmatprep.mubr.f32.mxu0 0.0
      %441 = vmatmul.mubr.f32.gmra.mrb[0].mxu0 %v188
      %v442 = vpop.f32.mrb[0].mxu0
      %v443 = vadd.f32 0.0, %v442
      %v444 = vpop.f32.mrb[0].mxu0
      %445 = vmatprep.mubr.f32.mxu0 0.0
      %446 = vmatmul.mubr.f32.gmra.mrb[0].mxu0 %v191
      %v447 = vpop.f32.mrb[0].mxu0
      %v448 = vadd.f32 0.0, %v447
      %v449 = vpop.f32.mrb[0].mxu0
      %450 = vmatprep.mubr.f32.mxu0 0.0
      %451 = vmatmul.mubr.f32.gmra.mrb[0].mxu0 %v194
      %v452 = vpop.f32.mrb[0].mxu0
      %v453 = vadd.f32 0.0, %v452
      %v454 = vpop.f32.mrb[0].mxu0
      %455 = vdwg.mxu0
      %v457 = vsel %vm276, %v443, 0
      %v460 = vsel %vm276, %v448, 0
      %v463 = vsel %vm276, %v453, 0
      %465 = vmatprep.subr.mxu0 0.0
      %466 = vmatpush1.msra.mxu0 %v182
      %467 = vmatprep.subr.mxu0 0.0
      %468 = vmatpush1.msra.mxu0 %v288
      %469 = vmatprep.subr.mxu0 0.0
      %470 = vmatpush1.msra.mxu0 0.0
      %471 = vmatprep.subr.mxu0 0.0
      %472 = vmatpush1.msra.mxu0 0.0
      %473 = vmatprep.subr.mxu0 0.0
      %474 = vmatpush1.msra.mxu0 0.0
      %475 = vmatprep.subr.mxu0 0.0
      %476 = vmatpush1.msra.mxu0 0.0
      %477 = vmatprep.subr.mxu0 0.0
      %478 = vmatpush1.msra.mxu0 0.0
      %479 = vmatprep.subr.mxu0 0.0
      %480 = vmatpush1.msra.mxu0 0.0
      %481 = vmatprep.subr.mxu0 0.0
      %482 = vmatpush1.msra.mxu0 0.0
      %483 = vmatprep.subr.mxu0 0.0
      %484 = vmatpush1.msra.mxu0 0.0
      %485 = vmatprep.subr.mxu0 0.0
      %486 = vmatpush1.msra.mxu0 0.0
      %487 = vmatprep.subr.mxu0 0.0
      %488 = vmatpush1.msra.mxu0 0.0
      %489 = vmatprep.subr.mxu0 0.0
      %490 = vmatpush1.msra.mxu0 0.0
      %491 = vmatprep.subr.mxu0 0.0
      %492 = vmatpush1.msra.mxu0 0.0
      %493 = vmatprep.subr.mxu0 0.0
      %494 = vmatpush1.msra.mxu0 0.0
      %495 = vmatprep.subr.mxu0 0.0
      %496 = vmatpush1.msra.mxu0 0.0
      %497 = vmatprep.subr.mxu0 0.0
      %498 = vmatpush1.msra.mxu0 0.0
      %499 = vmatprep.subr.mxu0 0.0
      %500 = vmatpush1.msra.mxu0 0.0
      %501 = vmatprep.subr.mxu0 0.0
      %502 = vmatpush1.msra.mxu0 0.0
      %503 = vmatprep.subr.mxu0 0.0
      %504 = vmatpush1.msra.mxu0 0.0
      %505 = vmatprep.subr.mxu0 0.0
      %506 = vmatpush1.msra.mxu0 0.0
      %507 = vmatprep.subr.mxu0 0.0
      %508 = vmatpush1.msra.mxu0 0.0
      %509 = vmatprep.subr.mxu0 0.0
      %510 = vmatpush1.msra.mxu0 0.0
      %511 = vmatprep.subr.mxu0 0.0
      %512 = vmatpush1.msra.mxu0 0.0
      %513 = vmatprep.subr.mxu0 0.0
      %514 = vmatpush1.msra.mxu0 0.0
      %515 = vmatprep.subr.mxu0 0.0
      %516 = vmatpush1.msra.mxu0 0.0
      %517 = vmatprep.subr.mxu0 0.0
      %518 = vmatpush1.msra.mxu0 0.0
      %519 = vmatprep.subr.mxu0 0.0
      %520 = vmatpush1.msra.mxu0 0.0
      %521 = vmatprep.subr.mxu0 0.0
      %522 = vmatpush1.msra.mxu0 0.0
      %523 = vmatprep.subr.mxu0 0.0
      %524 = vmatpush1.msra.mxu0 0.0
      %525 = vmatprep.subr.mxu0 0.0
      %526 = vmatpush1.msra.mxu0 0.0
      %527 = vmatprep.subr.mxu0 0.0
      %528 = vmatpush1.msra.mxu0 0.0
      %529 = vmatprep.mubr.f32.mxu0 0.0
      %530 = vmatmul.mubr.f32.gmra.mrb[0].mxu0 %v457
      %v531 = vpop.f32.mrb[0].mxu0
      %v532 = vadd.f32 0.0, %v531
      %v533 = vpop.f32.mrb[0].mxu0
      %534 = vmatprep.mubr.f32.mxu0 0.0
      %535 = vmatmul.mubr.f32.gmra.mrb[0].mxu0 %v460
      %v536 = vpop.f32.mrb[0].mxu0
      %v537 = vadd.f32 0.0, %v536
      %v538 = vpop.f32.mrb[0].mxu0
      %539 = vmatprep.mubr.f32.mxu0 0.0
      %540 = vmatmul.mubr.f32.gmra.mrb[0].mxu0 %v463
      %v541 = vpop.f32.mrb[0].mxu0
      %v542 = vadd.f32 0.0, %v541
      %v543 = vpop.f32.mrb[0].mxu0
      %544 = vdwg.mxu0
      %s545 = scalar_lea.vmem %s177, 24
      %546 = vst [vmem:[%s545] sm:$0xff] %v532
      %547 = vst [vmem:[%s545 + $0x8] sm:$0xff] %v537
      %548 = vst [vmem:[%s545 + $0x10] sm:$0xff] %v542
      %s549 = scalar_lea.vmem %s170, 32
      %v550 = vld [vmem:[%s549] sm:$0xff]
      %v551 = vld [vmem:[%s549 + $0x8] sm:$0xff]
      %552 = vmatprep.subr.mxu0 0.0
      %553 = vmatpush1.msra.mxu0 %v550
      %554 = vmatprep.subr.mxu0 0.0
      %555 = vmatpush1.msra.mxu0 %v551
      %556 = vmatprep.subr.mxu0 0.0
      %557 = vmatpush1.msra.mxu0 0.0
      %558 = vmatprep.subr.mxu0 0.0
      %559 = vmatpush1.msra.mxu0 0.0
      %560 = vmatprep.subr.mxu0 0.0
      %561 = vmatpush1.msra.mxu0 0.0
      %562 = vmatprep.subr.mxu0 0.0
      %563 = vmatpush1.msra.mxu0 0.0
      %564 = vmatprep.subr.mxu0 0.0
      %565 = vmatpush1.msra.mxu0 0.0
      %566 = vmatprep.subr.mxu0 0.0
      %567 = vmatpush1.msra.mxu0 0.0
      %568 = vmatprep.subr.mxu0 0.0
      %569 = vmatpush1.msra.mxu0 0.0
      %570 = vmatprep.subr.mxu0 0.0
      %571 = vmatpush1.msra.mxu0 0.0
      %572 = vmatprep.subr.mxu0 0.0
      %573 = vmatpush1.msra.mxu0 0.0
      %574 = vmatprep.subr.mxu0 0.0
      %575 = vmatpush1.msra.mxu0 0.0
      %576 = vmatprep.subr.mxu0 0.0
      %577 = vmatpush1.msra.mxu0 0.0
      %578 = vmatprep.subr.mxu0 0.0
      %579 = vmatpush1.msra.mxu0 0.0
      %580 = vmatprep.subr.mxu0 0.0
      %581 = vmatpush1.msra.mxu0 0.0
      %582 = vmatprep.subr.mxu0 0.0
      %583 = vmatpush1.msra.mxu0 0.0
      %584 = vmatprep.subr.mxu0 0.0
      %585 = vmatpush1.msra.mxu0 0.0
      %586 = vmatprep.subr.mxu0 0.0
      %587 = vmatpush1.msra.mxu0 0.0
      %588 = vmatprep.subr.mxu0 0.0
      %589 = vmatpush1.msra.mxu0 0.0
      %590 = vmatprep.subr.mxu0 0.0
      %591 = vmatpush1.msra.mxu0 0.0
      %592 = vmatprep.subr.mxu0 0.0
      %593 = vmatpush1.msra.mxu0 0.0
      %594 = vmatprep.subr.mxu0 0.0
      %595 = vmatpush1.msra.mxu0 0.0
      %596 = vmatprep.subr.mxu0 0.0
      %597 = vmatpush1.msra.mxu0 0.0
      %598 = vmatprep.subr.mxu0 0.0
      %599 = vmatpush1.msra.mxu0 0.0
      %600 = vmatprep.subr.mxu0 0.0
      %601 = vmatpush1.msra.mxu0 0.0
      %602 = vmatprep.subr.mxu0 0.0
      %603 = vmatpush1.msra.mxu0 0.0
      %604 = vmatprep.subr.mxu0 0.0
      %605 = vmatpush1.msra.mxu0 0.0
      %606 = vmatprep.subr.mxu0 0.0
      %607 = vmatpush1.msra.mxu0 0.0
      %608 = vmatprep.subr.mxu0 0.0
      %609 = vmatpush1.msra.mxu0 0.0
      %610 = vmatprep.subr.mxu0 0.0
      %611 = vmatpush1.msra.mxu0 0.0
      %612 = vmatprep.subr.mxu0 0.0
      %613 = vmatpush1.msra.mxu0 0.0
      %614 = vmatprep.subr.mxu0 0.0
      %615 = vmatpush1.msra.mxu0 0.0
      %616 = vmatprep.mubr.f32.mxu0 0.0
      %617 = vmatmul.mubr.f32.gmra.mrb[0].mxu0 %v188
      %v618 = vpop.f32.mrb[0].mxu0
      %v619 = vadd.f32 0.0, %v618
      %v620 = vpop.f32.mrb[0].mxu0
      %621 = vmatprep.mubr.f32.mxu0 0.0
      %622 = vmatmul.mubr.f32.gmra.mrb[0].mxu0 %v191
      %v623 = vpop.f32.mrb[0].mxu0
      %v624 = vadd.f32 0.0, %v623
      %v625 = vpop.f32.mrb[0].mxu0
      %626 = vmatprep.mubr.f32.mxu0 0.0
      %627 = vmatmul.mubr.f32.gmra.mrb[0].mxu0 %v194
      %v628 = vpop.f32.mrb[0].mxu0
      %v629 = vadd.f32 0.0, %v628
      %v630 = vpop.f32.mrb[0].mxu0
      %631 = vdwg.mxu0
      %v633 = vsel %vm276, %v619, 0
      %v636 = vsel %vm276, %v624, 0
      %v639 = vsel %vm276, %v629, 0
      %641 = vmatprep.subr.mxu0 0.0
      %642 = vmatpush1.msra.mxu0 %v182
      %643 = vmatprep.subr.mxu0 0.0
      %644 = vmatpush1.msra.mxu0 %v288
      %645 = vmatprep.subr.mxu0 0.0
      %646 = vmatpush1.msra.mxu0 0.0
      %647 = vmatprep.subr.mxu0 0.0
      %648 = vmatpush1.msra.mxu0 0.0
      %649 = vmatprep.subr.mxu0 0.0
      %650 = vmatpush1.msra.mxu0 0.0
      %651 = vmatprep.subr.mxu0 0.0
      %652 = vmatpush1.msra.mxu0 0.0
      %653 = vmatprep.subr.mxu0 0.0
      %654 = vmatpush1.msra.mxu0 0.0
      %655 = vmatprep.subr.mxu0 0.0
      %656 = vmatpush1.msra.mxu0 0.0
      %657 = vmatprep.subr.mxu0 0.0
      %658 = vmatpush1.msra.mxu0 0.0
      %659 = vmatprep.subr.mxu0 0.0
      %660 = vmatpush1.msra.mxu0 0.0
      %661 = vmatprep.subr.mxu0 0.0
      %662 = vmatpush1.msra.mxu0 0.0
      %663 = vmatprep.subr.mxu0 0.0
      %664 = vmatpush1.msra.mxu0 0.0
      %665 = vmatprep.subr.mxu0 0.0
      %666 = vmatpush1.msra.mxu0 0.0
      %667 = vmatprep.subr.mxu0 0.0
      %668 = vmatpush1.msra.mxu0 0.0
      %669 = vmatprep.subr.mxu0 0.0
      %670 = vmatpush1.msra.mxu0 0.0
      %671 = vmatprep.subr.mxu0 0.0
      %672 = vmatpush1.msra.mxu0 0.0
      %673 = vmatprep.subr.mxu0 0.0
      %674 = vmatpush1.msra.mxu0 0.0
      %675 = vmatprep.subr.mxu0 0.0
      %676 = vmatpush1.msra.mxu0 0.0
      %677 = vmatprep.subr.mxu0 0.0
      %678 = vmatpush1.msra.mxu0 0.0
      %679 = vmatprep.subr.mxu0 0.0
      %680 = vmatpush1.msra.mxu0 0.0
      %681 = vmatprep.subr.mxu0 0.0
      %682 = vmatpush1.msra.mxu0 0.0
      %683 = vmatprep.subr.mxu0 0.0
      %684 = vmatpush1.msra.mxu0 0.0
      %685 = vmatprep.subr.mxu0 0.0
      %686 = vmatpush1.msra.mxu0 0.0
      %687 = vmatprep.subr.mxu0 0.0
      %688 = vmatpush1.msra.mxu0 0.0
      %689 = vmatprep.subr.mxu0 0.0
      %690 = vmatpush1.msra.mxu0 0.0
      %691 = vmatprep.subr.mxu0 0.0
      %692 = vmatpush1.msra.mxu0 0.0
      %693 = vmatprep.subr.mxu0 0.0
      %694 = vmatpush1.msra.mxu0 0.0
      %695 = vmatprep.subr.mxu0 0.0
      %696 = vmatpush1.msra.mxu0 0.0
      %697 = vmatprep.subr.mxu0 0.0
      %698 = vmatpush1.msra.mxu0 0.0
      %699 = vmatprep.subr.mxu0 0.0
      %700 = vmatpush1.msra.mxu0 0.0
      %701 = vmatprep.subr.mxu0 0.0
      %702 = vmatpush1.msra.mxu0 0.0
      %703 = vmatprep.subr.mxu0 0.0
      %704 = vmatpush1.msra.mxu0 0.0
      %705 = vmatprep.mubr.f32.mxu0 0.0
      %706 = vmatmul.mubr.f32.gmra.mrb[0].mxu0 %v633
      %v707 = vpop.f32.mrb[0].mxu0
      %v708 = vadd.f32 0.0, %v707
      %v709 = vpop.f32.mrb[0].mxu0
      %710 = vmatprep.mubr.f32.mxu0 0.0
      %711 = vmatmul.mubr.f32.gmra.mrb[0].mxu0 %v636
      %v712 = vpop.f32.mrb[0].mxu0
      %v713 = vadd.f32 0.0, %v712
      %v714 = vpop.f32.mrb[0].mxu0
      %715 = vmatprep.mubr.f32.mxu0 0.0
      %716 = vmatmul.mubr.f32.gmra.mrb[0].mxu0 %v639
      %v717 = vpop.f32.mrb[0].mxu0
      %v718 = vadd.f32 0.0, %v717
      %v719 = vpop.f32.mrb[0].mxu0
      %720 = vdwg.mxu0
      %s721 = scalar_lea.vmem %s177, 48
      %722 = vst [vmem:[%s721] sm:$0xff] %v708
      %723 = vst [vmem:[%s721 + $0x8] sm:$0xff] %v713
      %724 = vst [vmem:[%s721 + $0x10] sm:$0xff] %v718
      %s725 = scalar_lea.vmem %s170, 48
      %v726 = vld [vmem:[%s725] sm:$0xff]
      %v727 = vld [vmem:[%s725 + $0x8] sm:$0xff]
      %728 = vmatprep.subr.mxu0 0.0
      %729 = vmatpush1.msra.mxu0 %v726
      %730 = vmatprep.subr.mxu0 0.0
      %731 = vmatpush1.msra.mxu0 %v727
      %732 = vmatprep.subr.mxu0 0.0
      %733 = vmatpush1.msra.mxu0 0.0
      %734 = vmatprep.subr.mxu0 0.0
      %735 = vmatpush1.msra.mxu0 0.0
      %736 = vmatprep.subr.mxu0 0.0
      %737 = vmatpush1.msra.mxu0 0.0
      %738 = vmatprep.subr.mxu0 0.0
      %739 = vmatpush1.msra.mxu0 0.0
      %740 = vmatprep.subr.mxu0 0.0
      %741 = vmatpush1.msra.mxu0 0.0
      %742 = vmatprep.subr.mxu0 0.0
      %743 = vmatpush1.msra.mxu0 0.0
      %744 = vmatprep.subr.mxu0 0.0
      %745 = vmatpush1.msra.mxu0 0.0
      %746 = vmatprep.subr.mxu0 0.0
      %747 = vmatpush1.msra.mxu0 0.0
      %748 = vmatprep.subr.mxu0 0.0
      %749 = vmatpush1.msra.mxu0 0.0
      %750 = vmatprep.subr.mxu0 0.0
      %751 = vmatpush1.msra.mxu0 0.0
      %752 = vmatprep.subr.mxu0 0.0
      %753 = vmatpush1.msra.mxu0 0.0
      %754 = vmatprep.subr.mxu0 0.0
      %755 = vmatpush1.msra.mxu0 0.0
      %756 = vmatprep.subr.mxu0 0.0
      %757 = vmatpush1.msra.mxu0 0.0
      %758 = vmatprep.subr.mxu0 0.0
      %759 = vmatpush1.msra.mxu0 0.0
      %760 = vmatprep.subr.mxu0 0.0
      %761 = vmatpush1.msra.mxu0 0.0
      %762 = vmatprep.subr.mxu0 0.0
      %763 = vmatpush1.msra.mxu0 0.0
      %764 = vmatprep.subr.mxu0 0.0
      %765 = vmatpush1.msra.mxu0 0.0
      %766 = vmatprep.subr.mxu0 0.0
      %767 = vmatpush1.msra.mxu0 0.0
      %768 = vmatprep.subr.mxu0 0.0
      %769 = vmatpush1.msra.mxu0 0.0
      %770 = vmatprep.subr.mxu0 0.0
      %771 = vmatpush1.msra.mxu0 0.0
      %772 = vmatprep.subr.mxu0 0.0
      %773 = vmatpush1.msra.mxu0 0.0
      %774 = vmatprep.subr.mxu0 0.0
      %775 = vmatpush1.msra.mxu0 0.0
      %776 = vmatprep.subr.mxu0 0.0
      %777 = vmatpush1.msra.mxu0 0.0
      %778 = vmatprep.subr.mxu0 0.0
      %779 = vmatpush1.msra.mxu0 0.0
      %780 = vmatprep.subr.mxu0 0.0
      %781 = vmatpush1.msra.mxu0 0.0
      %782 = vmatprep.subr.mxu0 0.0
      %783 = vmatpush1.msra.mxu0 0.0
      %784 = vmatprep.subr.mxu0 0.0
      %785 = vmatpush1.msra.mxu0 0.0
      %786 = vmatprep.subr.mxu0 0.0
      %787 = vmatpush1.msra.mxu0 0.0
      %788 = vmatprep.subr.mxu0 0.0
      %789 = vmatpush1.msra.mxu0 0.0
      %790 = vmatprep.subr.mxu0 0.0
      %791 = vmatpush1.msra.mxu0 0.0
      %792 = vmatprep.mubr.f32.mxu0 0.0
      %793 = vmatmul.mubr.f32.gmra.mrb[0].mxu0 %v188
      %v794 = vpop.f32.mrb[0].mxu0
      %v795 = vadd.f32 0.0, %v794
      %v796 = vpop.f32.mrb[0].mxu0
      %797 = vmatprep.mubr.f32.mxu0 0.0
      %798 = vmatmul.mubr.f32.gmra.mrb[0].mxu0 %v191
      %v799 = vpop.f32.mrb[0].mxu0
      %v800 = vadd.f32 0.0, %v799
      %v801 = vpop.f32.mrb[0].mxu0
      %802 = vmatprep.mubr.f32.mxu0 0.0
      %803 = vmatmul.mubr.f32.gmra.mrb[0].mxu0 %v194
      %v804 = vpop.f32.mrb[0].mxu0
      %v805 = vadd.f32 0.0, %v804
      %v806 = vpop.f32.mrb[0].mxu0
      %807 = vdwg.mxu0
      %v809 = vsel %vm276, %v795, 0
      %v812 = vsel %vm276, %v800, 0
      %v815 = vsel %vm276, %v805, 0
      %817 = vmatprep.subr.mxu0 0.0
      %818 = vmatpush1.msra.mxu0 %v182
      %819 = vmatprep.subr.mxu0 0.0
      %820 = vmatpush1.msra.mxu0 %v288
      %821 = vmatprep.subr.mxu0 0.0
      %822 = vmatpush1.msra.mxu0 0.0
      %823 = vmatprep.subr.mxu0 0.0
      %824 = vmatpush1.msra.mxu0 0.0
      %825 = vmatprep.subr.mxu0 0.0
      %826 = vmatpush1.msra.mxu0 0.0
      %827 = vmatprep.subr.mxu0 0.0
      %828 = vmatpush1.msra.mxu0 0.0
      %829 = vmatprep.subr.mxu0 0.0
      %830 = vmatpush1.msra.mxu0 0.0
      %831 = vmatprep.subr.mxu0 0.0
      %832 = vmatpush1.msra.mxu0 0.0
      %833 = vmatprep.subr.mxu0 0.0
      %834 = vmatpush1.msra.mxu0 0.0
      %835 = vmatprep.subr.mxu0 0.0
      %836 = vmatpush1.msra.mxu0 0.0
      %837 = vmatprep.subr.mxu0 0.0
      %838 = vmatpush1.msra.mxu0 0.0
      %839 = vmatprep.subr.mxu0 0.0
      %840 = vmatpush1.msra.mxu0 0.0
      %841 = vmatprep.subr.mxu0 0.0
      %842 = vmatpush1.msra.mxu0 0.0
      %843 = vmatprep.subr.mxu0 0.0
      %844 = vmatpush1.msra.mxu0 0.0
      %845 = vmatprep.subr.mxu0 0.0
      %846 = vmatpush1.msra.mxu0 0.0
      %847 = vmatprep.subr.mxu0 0.0
      %848 = vmatpush1.msra.mxu0 0.0
      %849 = vmatprep.subr.mxu0 0.0
      %850 = vmatpush1.msra.mxu0 0.0
      %851 = vmatprep.subr.mxu0 0.0
      %852 = vmatpush1.msra.mxu0 0.0
      %853 = vmatprep.subr.mxu0 0.0
      %854 = vmatpush1.msra.mxu0 0.0
      %855 = vmatprep.subr.mxu0 0.0
      %856 = vmatpush1.msra.mxu0 0.0
      %857 = vmatprep.subr.mxu0 0.0
      %858 = vmatpush1.msra.mxu0 0.0
      %859 = vmatprep.subr.mxu0 0.0
      %860 = vmatpush1.msra.mxu0 0.0
      %861 = vmatprep.subr.mxu0 0.0
      %862 = vmatpush1.msra.mxu0 0.0
      %863 = vmatprep.subr.mxu0 0.0
      %864 = vmatpush1.msra.mxu0 0.0
      %865 = vmatprep.subr.mxu0 0.0
      %866 = vmatpush1.msra.mxu0 0.0
      %867 = vmatprep.subr.mxu0 0.0
      %868 = vmatpush1.msra.mxu0 0.0
      %869 = vmatprep.subr.mxu0 0.0
      %870 = vmatpush1.msra.mxu0 0.0
      %871 = vmatprep.subr.mxu0 0.0
      %872 = vmatpush1.msra.mxu0 0.0
      %873 = vmatprep.subr.mxu0 0.0
      %874 = vmatpush1.msra.mxu0 0.0
      %875 = vmatprep.subr.mxu0 0.0
      %876 = vmatpush1.msra.mxu0 0.0
      %877 = vmatprep.subr.mxu0 0.0
      %878 = vmatpush1.msra.mxu0 0.0
      %879 = vmatprep.subr.mxu0 0.0
      %880 = vmatpush1.msra.mxu0 0.0
      %881 = vmatprep.mubr.f32.mxu0 0.0
      %882 = vmatmul.mubr.f32.gmra.mrb[0].mxu0 %v809
      %v883 = vpop.f32.mrb[0].mxu0
      %v884 = vadd.f32 0.0, %v883
      %v885 = vpop.f32.mrb[0].mxu0
      %886 = vmatprep.mubr.f32.mxu0 0.0
      %887 = vmatmul.mubr.f32.gmra.mrb[0].mxu0 %v812
      %v888 = vpop.f32.mrb[0].mxu0
      %v889 = vadd.f32 0.0, %v888
      %v890 = vpop.f32.mrb[0].mxu0
      %891 = vmatprep.mubr.f32.mxu0 0.0
      %892 = vmatmul.mubr.f32.gmra.mrb[0].mxu0 %v815
      %v893 = vpop.f32.mrb[0].mxu0
      %v894 = vadd.f32 0.0, %v893
      %v895 = vpop.f32.mrb[0].mxu0
      %896 = vdwg.mxu0
      %s897 = scalar_lea.vmem %s177, 72
      %898 = vst [vmem:[%s897] sm:$0xff] %v884
      %899 = vst [vmem:[%s897 + $0x8] sm:$0xff] %v889
      %900 = vst [vmem:[%s897 + $0x10] sm:$0xff] %v894
      %s901 = smul.u32 4, %s14
      %p902 = scmp.lt.s32.totalorder %s901, 7
      %s903 = scalar_select %p902, %s901, 7
      %s904 = smul.addr %s903, 3
      %s905 = smul.addr %s904, 8
      %s906 = scalar_lea.vmem %s3, %s905
      // Predicated region
      $region33: #{_resize_jit.1} parent=31 // pred_check
        %p907 = pneg %p100
      $region34: #{_resize_jit.1} parent=31 // pred_check_branch
        %909 = sbr.rel (%p907) target = $region36
      $region35: #{_resize_jit.1} parent=31 // pred_region
        %s910 = smul.u32 4, %s14
      $region36: #{_resize_jit.1} parent=31 // pred_fallthru
        _
    $region32: #{_resize_jit.1} parent=5 // pred_fallthru
      _
    %p911 = scmp.le.s32.totalorder 2, %s9
    // Predicated region
    $region37: #{_resize_jit.1} parent=5 // pred_check
      %p912 = pneg %p911
    $region38: #{_resize_jit.1} parent=5 // pred_check_branch
      %914 = sbr.rel (%p912) target = $region40
    $region39: #{_resize_jit.1} parent=5 // pred_region
      %s915 = ssub.s32 %s9, 2
      // Predicated region
      $region41: #{_resize_jit.1} parent=39 // pred_check
        %p916 = pneg %p106
      $region42: #{_resize_jit.1} parent=39 // pred_check_branch
        %918 = sbr.rel (%p916) target = $region44
      $region43: #{_resize_jit.1} parent=39 // pred_region
        %s919 = smul.u32 4, %s15
        %p920 = scmp.lt.s32.totalorder %s919, 7
        %s921 = scalar_select %p920, %s919, 7
        %s922 = smul.addr %s921, 3
        %s923 = smul.addr %s922, 8
        %s924 = scalar_lea.vmem %s3, %s923
      $region44: #{_resize_jit.1} parent=39 // pred_fallthru
        _
    $region40: #{_resize_jit.1} parent=5 // pred_fallthru
      _
  $region6: #{_resize_jit.1} parent=0 // loop_footer
    %s13 = sadd.s32 1, %s9
  $region7: #{_resize_jit.1} parent=0 // loop_footer_branch
    %8 = sbr.rel target = $region3
  $region8: #{_resize_jit.1} parent=0 // loop_exit
    _

</llo_original>
